<compile_context>
chip_gen: v7x
topology: tpu7x:2x2x1
jax: 0.10.0
libtpu: 0.0.40
codegen_flags: <defaults>
</compile_context>

<pallas_src>
import math
import functools

import jax
import jax.numpy as jnp
from jax.experimental import pallas as pl
from jax.experimental.pallas import tpu as pltpu


# ----------------------------------------------------------------------------
# Parameter / buffer setup (plain JAX "glue", mirrors nn.Module.__init__)
# ----------------------------------------------------------------------------
def make_positional_encoding_buffer(d_model: int, max_len: int = 5000) -> jnp.ndarray:
    """Builds the `pe` buffer exactly like the PyTorch __init__ ([max_len, 1, d_model])."""
    position = jnp.arange(max_len, dtype=jnp.float32)[:, None]          # [max_len, 1]
    div_term = jnp.exp(
        jnp.arange(0, d_model, 2, dtype=jnp.float32) * (-math.log(10000.0) / d_model)
    )                                                                    # [ceil(d/2)]
    pe = jnp.zeros((max_len, 1, d_model), dtype=jnp.float32)
    pe = pe.at[:, 0, 0::2].set(jnp.sin(position * div_term))
    pe = pe.at[:, 0, 1::2].set(jnp.cos(position * div_term)[:, : d_model // 2])
    return pe


# ----------------------------------------------------------------------------
# Kernels (operate on the lane-dense 2-D layout: x/out [s_blk, B*D], pe [s_blk, D])
# ----------------------------------------------------------------------------
def _add_pe_kernel(x_ref, pe_ref, o_ref, *, batch: int):
    x = x_ref[...].astype(jnp.float32)
    pe = pe_ref[...].astype(jnp.float32)
    if batch > 1:
        pe = jnp.tile(pe, (1, batch))        # broadcast pe over batch in-register
    o_ref[...] = (x + pe).astype(o_ref.dtype)


def _add_pe_dropout_kernel(x_ref, pe_ref, bits_ref, o_ref, *,
                           batch: int, threshold: int, scale: float):
    x = x_ref[...].astype(jnp.float32)
    pe = pe_ref[...].astype(jnp.float32)
    if batch > 1:
        pe = jnp.tile(pe, (1, batch))
    y = x + pe
    # Integer-threshold dropout: keep iff bits >= threshold  (P(keep) = 1 - p).
    keep = bits_ref[...] >= jnp.uint32(threshold)
    o_ref[...] = jnp.where(keep, y * jnp.float32(scale), 0.0).astype(o_ref.dtype)


# ----------------------------------------------------------------------------
# Block-size selection: largest row-tile that keeps the pipelined VMEM
# footprint small on every generation (v7x has only 64 MiB VMEM).
# ----------------------------------------------------------------------------
def _choose_row_block(num_rows: int, row_bytes: int,
                      target_block_bytes: int = 4 * 1024 * 1024) -> int:
    if num_rows * row_bytes <= target_block_bytes:
        return num_rows                       # whole array fits in one block
    blk = (target_block_bytes // max(row_bytes, 1)) // 8 * 8
    return int(max(8, min(blk, num_rows)))    # multiple of 8 (sublane constraint)


# ----------------------------------------------------------------------------
# Wrapper (the module's forward pass)
# ----------------------------------------------------------------------------
def positional_encoding_forward(
    x: jnp.ndarray,
    pe: jnp.ndarray,
    *,
    dropout_p: float = 0.1,
    training: bool = False,
    rng_key=None,
    min_bytes_for_pallas: int = 0,
) -> jnp.ndarray:
    """x: [seq_len, batch, d_model] -> same shape (x + pe[:S], then dropout)."""
    S, B, D = x.shape
    if S > pe.shape[0]:
        raise ValueError(f"seq_len {S} exceeds positional-encoding max_len {pe.shape[0]}")

    apply_dropout = training and dropout_p > 0.0
    if apply_dropout and dropout_p >= 1.0:
        return jnp.zeros_like(x)
    if apply_dropout and rng_key is None:
        rng_key = jax.random.PRNGKey(0)

    # Tiny inputs: kernel launch + per-step overhead dwarfs the work; let XLA fuse.
    total_bytes = x.size * x.dtype.itemsize
    if total_bytes < min_bytes_for_pallas:
        y = x + pe[:S].astype(x.dtype)
        if apply_dropout:
            keep = jax.random.bernoulli(rng_key, 1.0 - dropout_p, x.shape)
            y = jnp.where(keep, y / (1.0 - dropout_p), 0.0)
        return y.astype(x.dtype)

    # Lane-dense 2-D layout.
    x2 = x.reshape(S, B * D)                          # free, contiguous reshape
    pe_s = pe[:S, 0, :].astype(x.dtype)               # [S, D], matches x dtype (halves pe DMA for bf16)

    row_bytes = B * D * x.dtype.itemsize
    s_blk = _choose_row_block(S, row_bytes)
    grid = (pl.cdiv(S, s_blk),)

    x_spec = pl.BlockSpec((s_blk, B * D), lambda i: (i, 0))
    pe_spec = pl.BlockSpec((s_blk, D), lambda i: (i, 0))
    out_spec = pl.BlockSpec((s_blk, B * D), lambda i: (i, 0))
    out_shape = jax.ShapeDtypeStruct((S, B * D), x.dtype)
    cparams = pltpu.CompilerParams(
        dimension_semantics=("parallel",),            # lets v7x use both TensorCores
        vmem_limit_bytes=48 * 1024 * 1024,            # headroom, still < v7x 64 MiB
    )

    if not apply_dropout:
        out2 = pl.pallas_call(
            functools.partial(_add_pe_kernel, batch=B),
            out_shape=out_shape,
            grid=grid,
            in_specs=[x_spec, pe_spec],
            out_specs=out_spec,
            compiler_params=cparams,
        )(x2, pe_s)
    else:
        # TODO(synk): torch's dropout RNG stream cannot be bit-reproduced; only the
        # distribution (keep prob 1-p, scale 1/(1-p)) is matched.  The on-chip PRNG
        # (pltpu.prng_seed/prng_random_bits) would avoid streaming the bits array
        # from HBM but does not lower in interpret/CPU mode, so the bits are
        # generated portably with jax.random in the wrapper.
        bits = jax.random.bits(rng_key, (S, B * D), dtype=jnp.uint32)
        threshold = min(int(round(dropout_p * float(1 << 32))), (1 << 32) - 1)
        scale = 1.0 / (1.0 - dropout_p)
        bits_spec = pl.BlockSpec((s_blk, B * D), lambda i: (i, 0))
        out2 = pl.pallas_call(
            functools.partial(
                _add_pe_dropout_kernel, batch=B, threshold=threshold, scale=scale
            ),
            out_shape=out_shape,
            grid=grid,
            in_specs=[x_spec, pe_spec, bits_spec],
            out_specs=out_spec,
            compiler_params=cparams,
        )(x2, pe_s, bits)

    return out2.reshape(S, B, D)


# ----------------------------------------------------------------------------
# Demo / self-check
# ----------------------------------------------------------------------------
if __name__ == "__main__":
    d_model = 32
    max_len = 64
    seq_len = 8
    batch = 2
    p = 0.1

    key = jax.random.PRNGKey(0)
    kx, kdrop = jax.random.split(key)
    x = jax.random.normal(kx, (seq_len, batch, d_model), dtype=jnp.float32)
    pe = make_positional_encoding_buffer(d_model, max_len)

    # Eval mode (dropout = identity), checked against pure-JAX reference.
    out_eval = positional_encoding_forward(x, pe, dropout_p=p, training=False)
    out_eval = jax.block_until_ready(out_eval)
    ref = x + pe[:seq_len]
    assert out_eval.shape == x.shape and out_eval.dtype == x.dtype
    assert jnp.allclose(out_eval, ref, atol=1e-6, rtol=1e-6), "eval mismatch"

    # bf16 input path (exercises pe-dtype match + explicit store cast).
    x_bf16 = x.astype(jnp.bfloat16)
    out_bf16 = jax.block_until_ready(
        positional_encoding_forward(x_bf16, pe, dropout_p=p, training=False)
    )
    ref_bf16 = (
        x_bf16.astype(jnp.float32) + pe[:seq_len].astype(jnp.bfloat16).astype(jnp.float32)
    ).astype(jnp.bfloat16)
    assert out_bf16.dtype == jnp.bfloat16
    assert jnp.allclose(
        out_bf16.astype(jnp.float32), ref_bf16.astype(jnp.float32), atol=1e-2, rtol=1e-2
    ), "bf16 eval mismatch"

    # Training mode: inverted dropout.  Every output element must be either 0
    # (dropped) or (x + pe) / (1 - p) (kept).
    out_train = jax.block_until_ready(
        positional_encoding_forward(x, pe, dropout_p=p, training=True, rng_key=kdrop)
    )
    assert out_train.shape == x.shape and out_train.dtype == x.dtype
    scaled_ref = ref / (1.0 - p)
    kept_ok = jnp.where(
        out_train == 0.0, True, jnp.isclose(out_train, scaled_ref, atol=1e-5, rtol=1e-5)
    )
    assert bool(jnp.all(kept_ok)), "dropout values mismatch"

    print("KERNEL_OK")
</pallas_src>

<mosaic_0001>
module attributes {stable_mosaic.version = 11 : i64} {
  func.func @_add_pe_kernel(%arg0: i32, %arg1: memref<8x64xf32, #tpu.memory_space<vmem>>, %arg2: memref<8x32xf32, #tpu.memory_space<vmem>>, %arg3: memref<8x64xf32, #tpu.memory_space<vmem>>) attributes {dimension_semantics = [#tpu.dimension_semantics<parallel>], iteration_bounds = array<i64: 1>, scalar_prefetch = 0 : i64, scratch_operands = 0 : i64, tpu.core_type = #tpu.core_type<tc>, window_params = [{transform_indices = @transform_0, window_bounds = array<i64: 8, 64>}, {transform_indices = @transform_1, window_bounds = array<i64: 8, 32>}, {transform_indices = @transform_2, window_bounds = array<i64: 8, 64>}]} {
    %c0 = arith.constant 0 : index
    %c0_0 = arith.constant 0 : index
    %0 = vector.load %arg1[%c0, %c0_0] : memref<8x64xf32, #tpu.memory_space<vmem>>, vector<8x64xf32>
    %c0_1 = arith.constant 0 : index
    %c0_2 = arith.constant 0 : index
    %1 = vector.load %arg2[%c0_1, %c0_2] : memref<8x32xf32, #tpu.memory_space<vmem>>, vector<8x32xf32>
    %2 = tpu.concatenate %1, %1 in 1 : vector<8x32xf32>, vector<8x32xf32> -> vector<8x64xf32>
    %3 = arith.addf %0, %2 : vector<8x64xf32>
    %c0_3 = arith.constant 0 : index
    %c0_4 = arith.constant 0 : index
    %4 = vector.load %arg3[%c0_3, %c0_4] : memref<8x64xf32, #tpu.memory_space<vmem>>, vector<8x64xf32>
    tpu.vector_store %arg3[%c0_3, %c0_4], %3 {strides = array<i32>} : memref<8x64xf32, #tpu.memory_space<vmem>>, vector<8x64xf32>,
    return
  }
  func.func @transform_0(%arg0: i32) -> (i32, i32) {
    %c0_i32 = arith.constant 0 : i32
    %c0_i32_0 = arith.constant 0 : i32
    return %arg0, %c0_i32 : i32, i32
  }
  func.func @transform_1(%arg0: i32) -> (i32, i32) {
    %c0_i32 = arith.constant 0 : i32
    %c0_i32_0 = arith.constant 0 : i32
    return %arg0, %c0_i32 : i32, i32
  }
  func.func @transform_2(%arg0: i32) -> (i32, i32) {
    %c0_i32 = arith.constant 0 : i32
    %c0_i32_0 = arith.constant 0 : i32
    return %arg0, %c0_i32 : i32, i32
  }
}

</mosaic_0001>

<llo_original>
// kernel: tpu_custom_call.1
$region0: #{tpu_custom_call.1}
  #allocation0 [shape = 'u32[]', space=smem, size = 0x4, offset = 0x4, fixed_abs, tag = 'smem constant byte address 0x4 - core index']
  #allocation1 [shape = 'u32[144,128]{1,0:T(1,128)}', space=vmem, size = 0x12000, scoped, tag = 'internal scratch']
  %s0 = inlined_call_operand.hbm [shape: f32[8,64], index: 0, kind: input, shape index: {}]
  %s1 = inlined_call_operand.hbm [shape: f32[8,32], index: 1, kind: input, shape index: {}]
  %s2 = inlined_call_operand.hbm [shape: f32[8,64], index: 2, kind: output, shape index: {}]
  %s3 = sld [smem:[#allocation0]]
  $region26: #{tpu_custom_call.1} parent=0
    _
  %s5 = ssub.s32 1, %s3
  %s6 = scalar_select 0, %s5, %s3
  $region1: #{tpu_custom_call.1} parent=0
    #allocation2 [shape = 'u8[4096]{0}', space=vmem, size = 0x1000, scoped, tag = 'input window, operand 0, single buffered']
    #allocation3 [shape = 's32[1]{0}', space=sflag, size = 0x4, scoped, tag = 'scoped memory for tpu_custom_call.1']
    #allocation4 [shape = 's32[1]{0}', space=sflag, size = 0x4, scoped, tag = 'scoped memory for tpu_custom_call.1']
    #allocation5 [shape = 'u8[4096]{0}', space=vmem, size = 0x1000, scoped, tag = 'input window, operand 1, single buffered']
    #allocation6 [shape = 's32[1]{0}', space=sflag, size = 0x4, scoped, tag = 'scoped memory for tpu_custom_call.1']
    #allocation7 [shape = 'u8[4096]{0}', space=vmem, size = 0x1000, scoped, tag = 'output window, operand 0, single buffered']
    %7 = vsyncpa [#allocation3], 0
    %8 = vsyncpa [#allocation6], 0
    %9 = vsyncpa [#allocation4], 0
    // Predicated region
    $region2: #{tpu_custom_call.1} parent=1 // pred_check
      _
    $region3: #{tpu_custom_call.1} parent=1 // pred_check_branch
      %11 = sbr.rel (0) target = $region5
    $region4: #{tpu_custom_call.1} parent=1 // pred_region
      %s13 = ssub.s32 128, 128
      %14 = vsyncadd [#allocation3], %s13
      %s16 = sshll.u32 [#allocation2], 4
      %s17 = int_to_ptr.vmem [resolvable:$true] %s16
      %19 = dma.hbm_to_vmem [thread:$0]  %s0, 128, %s17, [#allocation3]
    $region5: #{tpu_custom_call.1} parent=1 // pred_fallthru
      _
    // Predicated region
    $region6: #{tpu_custom_call.1} parent=1 // pred_check
      _
    $region7: #{tpu_custom_call.1} parent=1 // pred_check_branch
      %21 = sbr.rel (0) target = $region9
    $region8: #{tpu_custom_call.1} parent=1 // pred_region
      %s23 = ssub.s32 128, 128
      %24 = vsyncadd [#allocation6], %s23
      %s26 = sshll.u32 [#allocation5], 4
      %s27 = int_to_ptr.vmem [resolvable:$true] %s26
      %29 = dma.hbm_to_vmem [thread:$0]  %s1, 128, %s27, [#allocation6]
    $region9: #{tpu_custom_call.1} parent=1 // pred_fallthru
      _
    // Predicated region
    $region10: #{tpu_custom_call.1} parent=1 // pred_check
      _
    $region11: #{tpu_custom_call.1} parent=1 // pred_check_branch
      %31 = sbr.rel (0) target = $region13
    $region12: #{tpu_custom_call.1} parent=1 // pred_region
      %32 = dma.done [#allocation3], 128
    $region13: #{tpu_custom_call.1} parent=1 // pred_fallthru
      _
    // Predicated region
    $region14: #{tpu_custom_call.1} parent=1 // pred_check
      _
    $region15: #{tpu_custom_call.1} parent=1 // pred_check_branch
      %34 = sbr.rel (0) target = $region17
    $region16: #{tpu_custom_call.1} parent=1 // pred_region
      %35 = dma.done [#allocation6], 128
    $region17: #{tpu_custom_call.1} parent=1 // pred_fallthru
      _
    %v36 = vld [vmem:[#allocation2] sm:$0xff]
    %v37 = vld [vmem:[#allocation5] sm:$0xff]
    %39 = vrot.lane.b32.xlu0 %v37, 32
    %v40 = vpop.permute.xlu0 %39
    %vm42 = vcmask 261120
    %v43 = vsel %vm42, %v37, %v40
    %v44 = vadd.f32 %v36, %v43
    %vm45 = vcmask 523264
    %46 = vst.msk [vmem:[#allocation7] sm:$0xff] %vm45, %v44
    // Predicated region
    $region18: #{tpu_custom_call.1} parent=1 // pred_check
      _
    $region19: #{tpu_custom_call.1} parent=1 // pred_check_branch
      %48 = sbr.rel (0) target = $region21
    $region20: #{tpu_custom_call.1} parent=1 // pred_region
      %s50 = ssub.s32 128, 128
      %51 = vsyncadd [#allocation4], %s50
      %s53 = sshll.u32 [#allocation7], 4
      %s54 = int_to_ptr.vmem [resolvable:$true] %s53
      %56 = dma.vmem_to_hbm [thread:$0]  %s54, 128, %s2, [#allocation4]
    $region21: #{tpu_custom_call.1} parent=1 // pred_fallthru
      _
    // Predicated region
    $region22: #{tpu_custom_call.1} parent=1 // pred_check
      _
    $region23: #{tpu_custom_call.1} parent=1 // pred_check_branch
      %58 = sbr.rel (0) target = $region25
    $region24: #{tpu_custom_call.1} parent=1 // pred_region
      %59 = dma.done [#allocation4], 128
    $region25: #{tpu_custom_call.1} parent=1 // pred_fallthru
      _
    %60 = vsyncpa [#allocation3], 1
    %61 = vsyncpa [#allocation6], 1
    %62 = vsyncpa [#allocation4], 1

</llo_original>
